<compile_context>
chip_gen: v6e
topology: v6e:2x2x1
jax: 0.10.0
libtpu: 0.0.40
codegen_flags: <defaults>
</compile_context>

<pallas_src>
import jax
import jax.numpy as jnp
import numpy as np
from jax import lax
from jax.experimental import pallas as pl
from jax.experimental.pallas import tpu as pltpu

KS = 7    # spatial-attention conv kernel size
PAD = 3   # padding=3 -> "same" output


def _cbam_kernel(x_ref, w1_ref, b1_ref, w2_ref, b2_ref, kc_ref, cb_ref, o_ref):
    x = x_ref[...].astype(jnp.float32)            # (TB, C, HW), lane axis = HW
    tb = x.shape[0]

    # ---------------- Channel attention ----------------
    # Global avg/max pool = single lane-axis reduce; both pooling branches and
    # all batch rows go through the shared MLP in one fused pass.
    avg_c = jnp.mean(x, axis=2)                   # (TB, C)
    max_c = jnp.max(x, axis=2)                    # (TB, C)
    pooled = jnp.concatenate([avg_c, max_c], axis=0)          # (2*TB, C)

    h = jnp.dot(pooled, w1_ref[...], preferred_element_type=jnp.float32)
    h = jnp.maximum(h + b1_ref[...], 0.0)         # (2*TB, mid)
    m = jnp.dot(h, w2_ref[...], preferred_element_type=jnp.float32)
    m = m + b2_ref[...]                           # (2*TB, C)
    ca = jax.nn.sigmoid(m[:tb] + m[tb:])          # (TB, C)

    # ------ Channel gating fused with channel-axis spatial pooling ------
    gated = x * ca[:, :, None]                    # (TB, C, HW)
    avg_s = jnp.mean(gated, axis=1)               # (TB, HW)  from in-flight values
    max_s = jnp.max(gated, axis=1)                # (TB, HW)
    o_ref[...] = gated.astype(o_ref.dtype)        # store now; bounds live range

    # ---------------- Spatial attention ----------------
    # 7x7 conv over the (avg, max) maps == ONE dense matmul with the zero
    # padding folded into the precomputed, stacked (2*HW, HW) matrix.
    pooled_s = jnp.concatenate([avg_s, max_s], axis=1)        # (TB, 2*HW)
    conv = jnp.dot(pooled_s.astype(kc_ref.dtype), kc_ref[...],
                   preferred_element_type=jnp.float32) + cb_ref[0]
    sa = jax.nn.sigmoid(conv)                     # (TB, HW)

    o_ref[...] = (o_ref[...].astype(jnp.float32) * sa[:, None, :]).astype(o_ref.dtype)


def _conv_as_matmul(conv_w, H, W):
    """Fold Conv2d(2, 1, 7, padding=3) incl. zero padding into two (H*W, H*W) matrices."""
    conv_w = jnp.asarray(conv_w, jnp.float32).reshape(2, KS, KS)
    di = np.arange(H)[:, None] - np.arange(H)[None, :] + PAD    # (H_in, H_out)
    dj = np.arange(W)[:, None] - np.arange(W)[None, :] + PAD    # (W_in, W_out)
    vi = (di >= 0) & (di < KS)
    vj = (dj >= 0) & (dj < KS)
    dic = np.clip(di, 0, KS - 1)
    djc = np.clip(dj, 0, KS - 1)
    mask = jnp.asarray(vi[:, None, :, None] & vj[None, :, None, :],
                       dtype=jnp.float32)                        # (H, W, H, W)
    k = conv_w[:, dic[:, None, :, None], djc[None, :, None, :]]  # (2, H, W, H, W)
    k = (k * mask[None]).reshape(2, H * W, H * W)
    return k[0], k[1]


def _pick_batch_tile(B, per_item_bytes, target_bytes, min_steps=4):
    """Largest batch tile that (a) fits the block-byte budget, (b) leaves at
    least `min_steps` grid steps when B allows (v7x megacore sharding + DMA /
    compute overlap on all generations), (c) divides B, preferring a multiple
    of 8 so (TB, C)/(TB, HW) intermediates stay sublane-aligned."""
    cap = int(max(1, min(B, target_bytes // max(per_item_bytes, 1))))
    cap = min(cap, max(1, B // min_steps))
    best, best8 = 1, 0
    for t in range(1, cap + 1):
        if B % t == 0:
            best = t
            if t % 8 == 0:
                best8 = t
    return best8 if best8 else best


def _const_spec(shape):
    """Grid-invariant operand: constant index map, single-buffered."""
    return pl.BlockSpec(shape, lambda b, _n=len(shape): (0,) * _n,
                        pipeline_mode=pl.Buffered(1))


def cbam_pallas(x, w1, b1, w2, b2, conv_w, conv_b, *,
                block_bytes=2 << 20, matmul_dtype=jnp.bfloat16):
    """CBAM forward.  Parameters use PyTorch layouts:
       w1: (mid, C), b1: (mid,)   -- Linear(C, mid)
       w2: (C, mid), b2: (C,)     -- Linear(mid, C)
       conv_w: (2, 7, 7) (or (1, 2, 7, 7)), conv_b: (1,)  -- Conv2d(2, 1, 7, pad=3)
    """
    B, C, H, W = x.shape
    HW = H * W
    mid = w1.shape[0]

    xf = x.reshape(B, C, HW)                         # lane-dense: lanes = H*W
    w1t = jnp.asarray(w1, jnp.float32).T             # (C, mid)
    w2t = jnp.asarray(w2, jnp.float32).T             # (mid, C)
    b1r = jnp.asarray(b1, jnp.float32).reshape(1, mid)
    b2r = jnp.asarray(b2, jnp.float32).reshape(1, C)
    k_avg, k_max = _conv_as_matmul(conv_w, H, W)
    kc = jnp.concatenate([k_avg, k_max], axis=0).astype(matmul_dtype)  # (2*HW, HW)
    cb = jnp.asarray(conv_b, jnp.float32).reshape(1)

    tb = _pick_batch_tile(B, C * HW * x.dtype.itemsize, block_bytes)
    grid = (B // tb,)

    out = pl.pallas_call(
        _cbam_kernel,
        out_shape=jax.ShapeDtypeStruct((B, C, HW), x.dtype),
        grid=grid,
        in_specs=[
            pl.BlockSpec((tb, C, HW), lambda b: (b, 0, 0)),       # x (batch tile)
            _const_spec((C, mid)),                                # W1^T
            _const_spec((1, mid)),                                # b1
            _const_spec((mid, C)),                                # W2^T
            _const_spec((1, C)),                                  # b2
            _const_spec((2 * HW, HW)),                            # stacked conv matrix (bf16)
            pl.BlockSpec(memory_space=pltpu.MemorySpace.SMEM),    # conv bias scalar
        ],
        out_specs=pl.BlockSpec((tb, C, HW), lambda b: (b, 0, 0)),
        compiler_params=pltpu.CompilerParams(
            dimension_semantics=("parallel",)),
    )(xf, w1t, b1r, w2t, b2r, kc, cb)
    return out.reshape(B, C, H, W)


def cbam_reference(x, w1, b1, w2, b2, conv_w, conv_b):
    """Pure-JAX reference matching the PyTorch CBAM forward."""
    def mlp(v):
        h = jnp.maximum(v @ w1.T + b1[None, :], 0.0)
        return h @ w2.T + b2[None, :]

    avg = x.mean(axis=(2, 3))
    mx = x.max(axis=(2, 3))
    ca = jax.nn.sigmoid(mlp(avg) + mlp(mx))
    out1 = x * ca[:, :, None, None]

    avg_s = out1.mean(axis=1, keepdims=True)
    max_s = out1.max(axis=1, keepdims=True)
    cat = jnp.concatenate([avg_s, max_s], axis=1)
    w = conv_w.reshape(1, 2, KS, KS)
    conv = lax.conv_general_dilated(
        cat, w, window_strides=(1, 1), padding=((PAD, PAD), (PAD, PAD)),
        dimension_numbers=("NCHW", "OIHW", "NCHW"))
    sa = jax.nn.sigmoid(conv + conv_b.reshape(1, 1, 1, 1))
    return out1 * sa


if __name__ == "__main__":
    B, C, H, W = 8, 32, 16, 16          # channel >= reduction(16) so mid >= 1
    mid = C // 16

    key = jax.random.PRNGKey(0)
    kx, k1, k2, k3, k4, k5, k6 = jax.random.split(key, 7)

    x = jax.random.normal(kx, (B, C, H, W), dtype=jnp.float32)
    w1 = 0.2 * jax.random.normal(k1, (mid, C), dtype=jnp.float32)    # Linear(C, mid).weight
    b1 = 0.1 * jax.random.normal(k2, (mid,), dtype=jnp.float32)      # Linear(C, mid).bias
    w2 = 0.2 * jax.random.normal(k3, (C, mid), dtype=jnp.float32)    # Linear(mid, C).weight
    b2 = 0.1 * jax.random.normal(k4, (C,), dtype=jnp.float32)        # Linear(mid, C).bias
    conv_w = 0.1 * jax.random.normal(k5, (2, KS, KS), dtype=jnp.float32)  # Conv2d(2,1,7).weight
    conv_b = 0.05 * jax.random.normal(k6, (1,), dtype=jnp.float32)        # Conv2d bias

    # Small block budget so the demo exercises a multi-step grid (TB=2, grid=(4,)),
    # i.e. the >=4-step megacore / pipelining path.
    out = cbam_pallas(x, w1, b1, w2, b2, conv_w, conv_b, block_bytes=256 << 10)
    out = jax.block_until_ready(out)

    ref = cbam_reference(x, w1, b1, w2, b2, conv_w, conv_b)
    # The 7x7 conv-as-matmul operands are fed to the MXU in bf16 (f32 accumulate),
    # so a ~1e-2 tolerance against the pure-f32 reference is expected.
    np.testing.assert_allclose(np.asarray(out), np.asarray(ref), rtol=1e-2, atol=1e-2)

    print("KERNEL_OK")
</pallas_src>

<mosaic_0001>
module attributes {stable_mosaic.version = 11 : i64} {
  func.func @_cbam_kernel(%arg0: i32, %arg1: memref<2x32x256xf32, #tpu.memory_space<vmem>>, %arg2: memref<32x2xf32, #tpu.memory_space<vmem>>, %arg3: memref<1x2xf32, #tpu.memory_space<vmem>>, %arg4: memref<2x32xf32, #tpu.memory_space<vmem>>, %arg5: memref<1x32xf32, #tpu.memory_space<vmem>>, %arg6: memref<512x256xbf16, #tpu.memory_space<vmem>>, %arg7: memref<1xf32, #tpu.memory_space<smem>>, %arg8: memref<2x32x256xf32, #tpu.memory_space<vmem>>) attributes {dimension_semantics = [#tpu.dimension_semantics<parallel>], iteration_bounds = array<i64: 4>, scalar_prefetch = 0 : i64, scratch_operands = 0 : i64, tpu.core_type = #tpu.core_type<tc>, window_params = [{transform_indices = @transform_0, window_bounds = array<i64: 2, 32, 256>}, {pipeline_mode = #tpu.pipeline_mode<synchronous>, transform_indices = @transform_1, window_bounds = array<i64: 32, 2>}, {pipeline_mode = #tpu.pipeline_mode<synchronous>, transform_indices = @transform_2, window_bounds = array<i64: 1, 2>}, {pipeline_mode = #tpu.pipeline_mode<synchronous>, transform_indices = @transform_3, window_bounds = array<i64: 2, 32>}, {pipeline_mode = #tpu.pipeline_mode<synchronous>, transform_indices = @transform_4, window_bounds = array<i64: 1, 32>}, {pipeline_mode = #tpu.pipeline_mode<synchronous>, transform_indices = @transform_5, window_bounds = array<i64: 512, 256>}, {transform_indices = @transform_6, window_bounds = array<i64: 1>}, {transform_indices = @transform_7, window_bounds = array<i64: 2, 32, 256>}]} {
    %c0 = arith.constant 0 : index
    %c0_0 = arith.constant 0 : index
    %c0_1 = arith.constant 0 : index
    %0 = vector.load %arg1[%c0, %c0_0, %c0_1] : memref<2x32x256xf32, #tpu.memory_space<vmem>>, vector<2x32x256xf32>
    %cst = arith.constant dense<0.000000e+00> : vector<2x32xf32>
    %1 = vector.multi_reduction <add>, %0, %cst [2] : vector<2x32x256xf32> to vector<2x32xf32>
    %cst_2 = arith.constant 2.560000e+02 : f32
    %2 = vector.broadcast %cst_2 : f32 to vector<2x32xf32>
    %3 = arith.divf %1, %2 : vector<2x32xf32>
    %cst_3 = arith.constant dense<0xFF800000> : vector<2x32xf32>
    %4 = vector.multi_reduction <maximumf>, %0, %cst_3 [2] : vector<2x32x256xf32> to vector<2x32xf32>
    %5 = tpu.concatenate %3, %4 in 0 : vector<2x32xf32>, vector<2x32xf32> -> vector<4x32xf32>
    %c0_4 = arith.constant 0 : index
    %c0_5 = arith.constant 0 : index
    %6 = vector.load %arg2[%c0_4, %c0_5] : memref<32x2xf32, #tpu.memory_space<vmem>>, vector<32x2xf32>
    %cst_6 = arith.constant dense<0.000000e+00> : vector<4x2xf32>
    %7 = tpu.matmul %5, %6, %cst_6 {dimension_numbers = #tpu.dot_dimension_numbers<[1], [0], [0], [1], [0, 0, 1, 1], [], []>} : vector<4x32xf32>, vector<32x2xf32>, vector<4x2xf32> -> vector<4x2xf32>
    %c0_7 = arith.constant 0 : index
    %c0_8 = arith.constant 0 : index
    %8 = vector.load %arg3[%c0_7, %c0_8] : memref<1x2xf32, #tpu.memory_space<vmem>>, vector<1x2xf32>
    %9 = vector.broadcast %8 : vector<1x2xf32> to vector<4x2xf32>
    %10 = arith.addf %7, %9 : vector<4x2xf32>
    %cst_9 = arith.constant 0.000000e+00 : f32
    %11 = vector.broadcast %cst_9 : f32 to vector<4x2xf32>
    %12 = arith.maximumf %10, %11 : vector<4x2xf32>
    %c0_10 = arith.constant 0 : index
    %c0_11 = arith.constant 0 : index
    %13 = vector.load %arg4[%c0_10, %c0_11] : memref<2x32xf32, #tpu.memory_space<vmem>>, vector<2x32xf32>
    %cst_12 = arith.constant dense<0.000000e+00> : vector<4x32xf32>
    %14 = tpu.matmul %12, %13, %cst_12 {dimension_numbers = #tpu.dot_dimension_numbers<[1], [0], [0], [1], [0, 0, 1, 1], [], []>} : vector<4x2xf32>, vector<2x32xf32>, vector<4x32xf32> -> vector<4x32xf32>
    %c0_13 = arith.constant 0 : index
    %c0_14 = arith.constant 0 : index
    %15 = vector.load %arg5[%c0_13, %c0_14] : memref<1x32xf32, #tpu.memory_space<vmem>>, vector<1x32xf32>
    %16 = vector.broadcast %15 : vector<1x32xf32> to vector<4x32xf32>
    %17 = arith.addf %14, %16 : vector<4x32xf32>
    %18 = vector.extract_strided_slice %17 {offsets = [0, 0], sizes = [2, 32], strides = [1, 1]} : vector<4x32xf32> to vector<2x32xf32>
    %19 = vector.extract_strided_slice %17 {offsets = [2, 0], sizes = [2, 32], strides = [1, 1]} : vector<4x32xf32> to vector<2x32xf32>
    %20 = arith.addf %18, %19 : vector<2x32xf32>
    %21 = arith.negf %20 : vector<2x32xf32>
    %22 = math.exp %21 : vector<2x32xf32>
    %cst_15 = arith.constant 1.000000e+00 : f32
    %23 = vector.broadcast %cst_15 : f32 to vector<2x32xf32>
    %24 = arith.addf %23, %22 : vector<2x32xf32>
    %25 = arith.divf %23, %24 : vector<2x32xf32>
    %26 = vector.shape_cast %25 : vector<2x32xf32> to vector<2x32x1xf32>
    %27 = vector.broadcast %26 : vector<2x32x1xf32> to vector<2x32x256xf32>
    %28 = arith.mulf %0, %27 : vector<2x32x256xf32>
    %cst_16 = arith.constant dense<0.000000e+00> : vector<2x256xf32>
    %29 = vector.multi_reduction <add>, %28, %cst_16 [1] : vector<2x32x256xf32> to vector<2x256xf32>
    %cst_17 = arith.constant 3.200000e+01 : f32
    %30 = vector.broadcast %cst_17 : f32 to vector<2x256xf32>
    %31 = arith.divf %29, %30 : vector<2x256xf32>
    %cst_18 = arith.constant dense<0xFF800000> : vector<2x256xf32>
    %32 = vector.multi_reduction <maximumf>, %28, %cst_18 [1] : vector<2x32x256xf32> to vector<2x256xf32>
    %c0_19 = arith.constant 0 : index
    %c0_20 = arith.constant 0 : index
    %c0_21 = arith.constant 0 : index
    %33 = vector.load %arg8[%c0_19, %c0_20, %c0_21] : memref<2x32x256xf32, #tpu.memory_space<vmem>>, vector<2x32x256xf32>
    tpu.vector_store %arg8[%c0_19, %c0_20, %c0_21], %28 {strides = array<i32>} : memref<2x32x256xf32, #tpu.memory_space<vmem>>, vector<2x32x256xf32>,
    %34 = tpu.concatenate %31, %32 in 1 : vector<2x256xf32>, vector<2x256xf32> -> vector<2x512xf32>
    %35 = arith.truncf %34 : vector<2x512xf32> to vector<2x512xbf16>
    %c0_22 = arith.constant 0 : index
    %c0_23 = arith.constant 0 : index
    %36 = vector.load %arg6[%c0_22, %c0_23] : memref<512x256xbf16, #tpu.memory_space<vmem>>, vector<512x256xbf16>
    %cst_24 = arith.constant dense<0.000000e+00> : vector<2x256xf32>
    %37 = tpu.matmul %35, %36, %cst_24 {dimension_numbers = #tpu.dot_dimension_numbers<[1], [0], [0], [1], [0, 0, 1, 1], [], []>} : vector<2x512xbf16>, vector<512x256xbf16>, vector<2x256xf32> -> vector<2x256xf32>
    %c0_25 = arith.constant 0 : index
    %38 = memref.load %arg7[%c0_25] : memref<1xf32, #tpu.memory_space<smem>>
    %39 = vector.broadcast %38 : f32 to vector<2x256xf32>
    %40 = arith.addf %37, %39 : vector<2x256xf32>
    %41 = arith.negf %40 : vector<2x256xf32>
    %42 = math.exp %41 : vector<2x256xf32>
    %cst_26 = arith.constant 1.000000e+00 : f32
    %43 = vector.broadcast %cst_26 : f32 to vector<2x256xf32>
    %44 = arith.addf %43, %42 : vector<2x256xf32>
    %45 = arith.divf %43, %44 : vector<2x256xf32>
    %c0_27 = arith.constant 0 : index
    %c0_28 = arith.constant 0 : index
    %c0_29 = arith.constant 0 : index
    %46 = vector.load %arg8[%c0_27, %c0_28, %c0_29] : memref<2x32x256xf32, #tpu.memory_space<vmem>>, vector<2x32x256xf32>
    %47 = vector.shape_cast %45 : vector<2x256xf32> to vector<2x1x256xf32>
    %48 = vector.broadcast %47 : vector<2x1x256xf32> to vector<2x32x256xf32>
    %49 = arith.mulf %46, %48 : vector<2x32x256xf32>
    %c0_30 = arith.constant 0 : index
    %c0_31 = arith.constant 0 : index
    %c0_32 = arith.constant 0 : index
    %50 = vector.load %arg8[%c0_30, %c0_31, %c0_32] : memref<2x32x256xf32, #tpu.memory_space<vmem>>, vector<2x32x256xf32>
    tpu.vector_store %arg8[%c0_30, %c0_31, %c0_32], %49 {strides = array<i32>} : memref<2x32x256xf32, #tpu.memory_space<vmem>>, vector<2x32x256xf32>,
    return
  }
  func.func @transform_0(%arg0: i32) -> (i32, i32, i32) {
    %c0_i32 = arith.constant 0 : i32
    %c0_i32_0 = arith.constant 0 : i32
    %c0_i32_1 = arith.constant 0 : i32
    return %arg0, %c0_i32, %c0_i32_0 : i32, i32, i32
  }
  func.func @transform_1(%arg0: i32) -> (i32, i32) {
    %c0_i32 = arith.constant 0 : i32
    %c0_i32_0 = arith.constant 0 : i32
    %c0_i32_1 = arith.constant 0 : i32
    return %c0_i32, %c0_i32_0 : i32, i32
  }
  func.func @transform_2(%arg0: i32) -> (i32, i32) {
    %c0_i32 = arith.constant 0 : i32
    %c0_i32_0 = arith.constant 0 : i32
    %c0_i32_1 = arith.constant 0 : i32
    return %c0_i32, %c0_i32_0 : i32, i32
  }
  func.func @transform_3(%arg0: i32) -> (i32, i32) {
    %c0_i32 = arith.constant 0 : i32
    %c0_i32_0 = arith.constant 0 : i32
    %c0_i32_1 = arith.constant 0 : i32
    return %c0_i32, %c0_i32_0 : i32, i32
  }
  func.func @transform_4(%arg0: i32) -> (i32, i32) {
    %c0_i32 = arith.constant 0 : i32
    %c0_i32_0 = arith.constant 0 : i32
    %c0_i32_1 = arith.constant 0 : i32
    return %c0_i32, %c0_i32_0 : i32, i32
  }
  func.func @transform_5(%arg0: i32) -> (i32, i32) {
    %c0_i32 = arith.constant 0 : i32
    %c0_i32_0 = arith.constant 0 : i32
    %c0_i32_1 = arith.constant 0 : i32
    return %c0_i32, %c0_i32_0 : i32, i32
  }
  func.func @transform_6(%arg0: i32) -> i32 {
    %c0_i32 = arith.constant 0 : i32
    %c0_i32_0 = arith.constant 0 : i32
    return %c0_i32 : i32
  }
  func.func @transform_7(%arg0: i32) -> (i32, i32, i32) {
    %c0_i32 = arith.constant 0 : i32
    %c0_i32_0 = arith.constant 0 : i32
    %c0_i32_1 = arith.constant 0 : i32
    return %arg0, %c0_i32, %c0_i32_0 : i32, i32, i32
  }
}

</mosaic_0001>

<llo_original>
// kernel: tpu_custom_call.1
$region0: #{tpu_custom_call.1}
  #allocation0 [shape = 'u32[]', space=smem, size = 0x4, offset = 0x4, fixed_abs, tag = 'smem constant byte address 0x4 - core index']
  #allocation1 [shape = 'u32[144,128]{1,0:T(1,128)}', space=vmem, size = 0x12000, scoped, tag = 'internal scratch']
  #allocation2 [shape = 'f32[1]{0:T(128)S(6)}', space=smem, size = 0x200, scoped, tag = 'scoped memory for tpu_custom_call.1']
  %s0 = inlined_call_operand.hbm [shape: f32[8,32,256], index: 0, kind: input, shape index: {}]
  %s1 = inlined_call_operand.vmem [shape: f32[32,2], index: 1, kind: input, shape index: {}]
  %s2 = inlined_call_operand.vmem [shape: f32[1,2], index: 2, kind: input, shape index: {}]
  %s3 = inlined_call_operand.vmem [shape: f32[2,32], index: 3, kind: input, shape index: {}]
  %s4 = inlined_call_operand.vmem [shape: f32[1,32], index: 4, kind: input, shape index: {}]
  %s5 = inlined_call_operand.hbm [shape: bf16[512,256], index: 5, kind: input, shape index: {}]
  %s6 = inlined_call_operand.<no memory space> [shape: f32[1], index: 6, kind: input, shape index: {}]
  %s7 = inlined_call_operand.hbm [shape: f32[8,32,256], index: 7, kind: output, shape index: {}]
  %s8 = sld [smem:[#allocation0]]
  $region69: #{tpu_custom_call.1} parent=0
    _
  %s10 = ssub.s32 1, %s8
  %s11 = scalar_select 0, %s10, %s8
  %12 = sst [smem:[#allocation2]] %s6
  $region1: #{tpu_custom_call.1} parent=0
    #allocation3 [shape = 'u8[131072]{0}', space=vmem, size = 0x20000, scoped, tag = 'input window, operand 0']
    #allocation4 [shape = 's32[2]{0}', space=sflag, size = 0x8, scoped, tag = 'scoped memory for tpu_custom_call.1']
    #allocation5 [shape = 's32[2]{0}', space=sflag, size = 0x8, scoped, tag = 'scoped memory for tpu_custom_call.1']
    #allocation6 [shape = 'u8[262144]{0}', space=vmem, size = 0x40000, scoped, tag = 'input window, operand 5, single buffered']
    #allocation7 [shape = 's32[1]{0}', space=sflag, size = 0x4, scoped, tag = 'scoped memory for tpu_custom_call.1']
    #allocation8 [shape = 'u8[131072]{0}', space=vmem, size = 0x20000, scoped, tag = 'output window, operand 0']
    %13 = vsyncpa [#allocation4], 0
    %s14 = scalar_lea.sflag [#allocation4], 1
    %15 = vsyncpa %s14, 0
    %16 = vsyncpa [#allocation7], 0
    %17 = vsyncpa [#allocation5], 0
    %s18 = scalar_lea.sflag [#allocation5], 1
    %19 = vsyncpa %s18, 0
    loop: start=0, step=1, limit=6
    $region2: #{tpu_custom_call.1} parent=1 // loop_pre_header
      _
    $region3: #{tpu_custom_call.1} parent=1 // loop_header
      %s21 = sphi 0, %s25
      %p22 = scmp.ge.s32.totalorder %s21, 6
      %s31 = sphi 0, %s33
      %s34 = sphi 0, %s31
      %s35 = sphi 0, %s34
      %s51 = sphi 0, %s35
      %s55 = sphi 0, %s55
      %s57 = sphi 0, %s55
      %s58 = sphi 0, %s57
      %s72 = sphi 0, %s58
      %s76 = sphi 0, %s76
      %s78 = sphi 0, %s76
      %s79 = sphi 0, %s78
      %s93 = sphi 0, %s79
      %s97 = sphi 0, %s97
      %s99 = sphi 0, %s97
      %s100 = sphi 0, %s99
      %s114 = sphi 0, %s100
      %s118 = sphi 0, %s118
      %s120 = sphi 0, %s118
      %s121 = sphi 0, %s120
      %s135 = sphi 0, %s121
      %s139 = sphi 0, %s139
      %s141 = sphi 0, %s139
      %s142 = sphi 0, %s141
      %s156 = sphi 0, %s142
      %s160 = sphi 0, %s160
      %s162 = sphi 0, %s160
      %s163 = sphi 0, %s162
      %s177 = sphi 0, %s163
      %s183 = sphi 0, %s185
      %s186 = sphi 0, %s183
      %s187 = sphi 0, %s186
      %s203 = sphi 0, %s187
    $region4: #{tpu_custom_call.1} parent=1 // loop_header_branch
      %24 = sbr.rel (%p22) target = $region8
    $region5: #{tpu_custom_call.1} parent=1 // loop_body
      %s26 = ssub.s32 %s21, 1
      %s27 = ssub.s32 %s21, 2
      %s28 = sadd.s32 %s21, 1
      %s29 = ssub.s32 %s21, %s28
      %p30 = scmp.eq.s32.totalorder %s29, 0
      %s32 = sadd.s32 %s31, 1
      %s33 = scalar_select %p30, %s31, %s32
      %p36 = pneg %p30
      %p37 = scmp.eq.s32.totalorder %s21, 3
      %p38 = por %p36, %p37
      %p39 = scmp.ne.s32.totalorder %s31, %s34
      %p40 = scmp.eq.s32.totalorder %s21, 0
      %p41 = por %p39, %p40
      %p42 = scmp.ne.s32.totalorder %s31, %s34
      %p43 = scmp.eq.s32.totalorder %s26, 3
      %p44 = por %p42, %p43
      %p45 = scmp.ne.s32.totalorder %s34, %s35
      %p46 = scmp.eq.s32.totalorder %s26, 0
      %p47 = por %p45, %p46
      %p48 = scmp.ne.s32.totalorder %s34, %s35
      %p49 = scmp.eq.s32.totalorder %s27, 3
      %p50 = por %p48, %p49
      %p52 = scmp.ne.s32.totalorder %s35, %s51
      %p53 = scmp.eq.s32.totalorder %s27, 0
      %p54 = por %p52, %p53
      %s56 = sadd.s32 %s55, 1
      %p59 = scmp.eq.s32.totalorder %s21, 3
      %p60 = scmp.ne.s32.totalorder %s55, %s57
      %p61 = scmp.eq.s32.totalorder %s21, 0
      %p62 = por %p60, %p61
      %p63 = scmp.ne.s32.totalorder %s55, %s57
      %p64 = scmp.eq.s32.totalorder %s26, 3
      %p65 = por %p63, %p64
      %p66 = scmp.ne.s32.totalorder %s57, %s58
      %p67 = scmp.eq.s32.totalorder %s26, 0
      %p68 = por %p66, %p67
      %p69 = scmp.ne.s32.totalorder %s57, %s58
      %p70 = scmp.eq.s32.totalorder %s27, 3
      %p71 = por %p69, %p70
      %p73 = scmp.ne.s32.totalorder %s58, %s72
      %p74 = scmp.eq.s32.totalorder %s27, 0
      %p75 = por %p73, %p74
      %s77 = sadd.s32 %s76, 1
      %p80 = scmp.eq.s32.totalorder %s21, 3
      %p81 = scmp.ne.s32.totalorder %s76, %s78
      %p82 = scmp.eq.s32.totalorder %s21, 0
      %p83 = por %p81, %p82
      %p84 = scmp.ne.s32.totalorder %s76, %s78
      %p85 = scmp.eq.s32.totalorder %s26, 3
      %p86 = por %p84, %p85
      %p87 = scmp.ne.s32.totalorder %s78, %s79
      %p88 = scmp.eq.s32.totalorder %s26, 0
      %p89 = por %p87, %p88
      %p90 = scmp.ne.s32.totalorder %s78, %s79
      %p91 = scmp.eq.s32.totalorder %s27, 3
      %p92 = por %p90, %p91
      %p94 = scmp.ne.s32.totalorder %s79, %s93
      %p95 = scmp.eq.s32.totalorder %s27, 0
      %p96 = por %p94, %p95
      %s98 = sadd.s32 %s97, 1
      %p101 = scmp.eq.s32.totalorder %s21, 3
      %p102 = scmp.ne.s32.totalorder %s97, %s99
      %p103 = scmp.eq.s32.totalorder %s21, 0
      %p104 = por %p102, %p103
      %p105 = scmp.ne.s32.totalorder %s97, %s99
      %p106 = scmp.eq.s32.totalorder %s26, 3
      %p107 = por %p105, %p106
      %p108 = scmp.ne.s32.totalorder %s99, %s100
      %p109 = scmp.eq.s32.totalorder %s26, 0
      %p110 = por %p108, %p109
      %p111 = scmp.ne.s32.totalorder %s99, %s100
      %p112 = scmp.eq.s32.totalorder %s27, 3
      %p113 = por %p111, %p112
      %p115 = scmp.ne.s32.totalorder %s100, %s114
      %p116 = scmp.eq.s32.totalorder %s27, 0
      %p117 = por %p115, %p116
      %s119 = sadd.s32 %s118, 1
      %p122 = scmp.eq.s32.totalorder %s21, 3
      %p123 = scmp.ne.s32.totalorder %s118, %s120
      %p124 = scmp.eq.s32.totalorder %s21, 0
      %p125 = por %p123, %p124
      %p126 = scmp.ne.s32.totalorder %s118, %s120
      %p127 = scmp.eq.s32.totalorder %s26, 3
      %p128 = por %p126, %p127
      %p129 = scmp.ne.s32.totalorder %s120, %s121
      %p130 = scmp.eq.s32.totalorder %s26, 0
      %p131 = por %p129, %p130
      %p132 = scmp.ne.s32.totalorder %s120, %s121
      %p133 = scmp.eq.s32.totalorder %s27, 3
      %p134 = por %p132, %p133
      %p136 = scmp.ne.s32.totalorder %s121, %s135
      %p137 = scmp.eq.s32.totalorder %s27, 0
      %p138 = por %p136, %p137
      %s140 = sadd.s32 %s139, 1
      %p143 = scmp.eq.s32.totalorder %s21, 3
      %p144 = scmp.ne.s32.totalorder %s139, %s141
      %p145 = scmp.eq.s32.totalorder %s21, 0
      %p146 = por %p144, %p145
      %p147 = scmp.ne.s32.totalorder %s139, %s141
      %p148 = scmp.eq.s32.totalorder %s26, 3
      %p149 = por %p147, %p148
      %p150 = scmp.ne.s32.totalorder %s141, %s142
      %p151 = scmp.eq.s32.totalorder %s26, 0
      %p152 = por %p150, %p151
      %p153 = scmp.ne.s32.totalorder %s141, %s142
      %p154 = scmp.eq.s32.totalorder %s27, 3
      %p155 = por %p153, %p154
      %p157 = scmp.ne.s32.totalorder %s142, %s156
      %p158 = scmp.eq.s32.totalorder %s27, 0
      %p159 = por %p157, %p158
      %s161 = sadd.s32 %s160, 1
      %p164 = scmp.eq.s32.totalorder %s21, 3
      %p165 = scmp.ne.s32.totalorder %s160, %s162
      %p166 = scmp.eq.s32.totalorder %s21, 0
      %p167 = por %p165, %p166
      %p168 = scmp.ne.s32.totalorder %s160, %s162
      %p169 = scmp.eq.s32.totalorder %s26, 3
      %p170 = por %p168, %p169
      %p171 = scmp.ne.s32.totalorder %s162, %s163
      %p172 = scmp.eq.s32.totalorder %s26, 0
      %p173 = por %p171, %p172
      %p174 = scmp.ne.s32.totalorder %s162, %s163
      %p175 = scmp.eq.s32.totalorder %s27, 3
      %p176 = por %p174, %p175
      %p178 = scmp.ne.s32.totalorder %s163, %s177
      %p179 = scmp.eq.s32.totalorder %s27, 0
      %p180 = por %p178, %p179
      %s181 = ssub.s32 %s21, %s28
      %p182 = scmp.eq.s32.totalorder %s181, 0
      %s184 = sadd.s32 %s183, 1
      %s185 = scalar_select %p182, %s183, %s184
      %p188 = pneg %p182
      %p189 = scmp.eq.s32.totalorder %s21, 3
      %p190 = por %p188, %p189
      %p191 = scmp.ne.s32.totalorder %s183, %s186
      %p192 = scmp.eq.s32.totalorder %s21, 0
      %p193 = por %p191, %p192
      %p194 = scmp.ne.s32.totalorder %s183, %s186
      %p195 = scmp.eq.s32.totalorder %s26, 3
      %p196 = por %p194, %p195
      %p197 = scmp.ne.s32.totalorder %s186, %s187
      %p198 = scmp.eq.s32.totalorder %s26, 0
      %p199 = por %p197, %p198
      %p200 = scmp.ne.s32.totalorder %s186, %s187
      %p201 = scmp.eq.s32.totalorder %s27, 3
      %p202 = por %p200, %p201
      %p204 = scmp.ne.s32.totalorder %s187, %s203
      %p205 = scmp.eq.s32.totalorder %s27, 0
      %p206 = por %p204, %p205
      %p207 = scmp.le.s32.totalorder 1, %s21
      %p208 = scmp.lt.s32.totalorder %s21, 5
      %p209 = pnand %p207, %p208
      %p210 = pneg %p209
      // Predicated region
      $region9: #{tpu_custom_call.1} parent=5 // pred_check
        _
      $region10: #{tpu_custom_call.1} parent=5 // pred_check_branch
        %212 = sbr.rel (%p209) target = $region12
      $region11: #{tpu_custom_call.1} parent=5 // pred_region
        %s213 = ssub.s32 %s21, 1
        // Predicated region
        $region13: #{tpu_custom_call.1} parent=11 // pred_check
          %p214 = pneg %p68
        $region14: #{tpu_custom_call.1} parent=11 // pred_check_branch
          %216 = sbr.rel (%p214) target = $region16
        $region15: #{tpu_custom_call.1} parent=11 // pred_region
          _
        $region16: #{tpu_custom_call.1} parent=11 // pred_fallthru
          _
        // Predicated region
        $region17: #{tpu_custom_call.1} parent=11 // pred_check
          %p217 = pneg %p89
        $region18: #{tpu_custom_call.1} parent=11 // pred_check_branch
          %219 = sbr.rel (%p217) target = $region20
        $region19: #{tpu_custom_call.1} parent=11 // pred_region
          _
        $region20: #{tpu_custom_call.1} parent=11 // pred_fallthru
          _
        // Predicated region
        $region21: #{tpu_custom_call.1} parent=11 // pred_check
          %p220 = pneg %p110
        $region22: #{tpu_custom_call.1} parent=11 // pred_check_branch
          %222 = sbr.rel (%p220) target = $region24
        $region23: #{tpu_custom_call.1} parent=11 // pred_region
          _
        $region24: #{tpu_custom_call.1} parent=11 // pred_fallthru
          _
        // Predicated region
        $region25: #{tpu_custom_call.1} parent=11 // pred_check
          %p223 = pneg %p131
        $region26: #{tpu_custom_call.1} parent=11 // pred_check_branch
          %225 = sbr.rel (%p223) target = $region28
        $region27: #{tpu_custom_call.1} parent=11 // pred_region
          _
        $region28: #{tpu_custom_call.1} parent=11 // pred_fallthru
          _
        // Predicated region
        $region29: #{tpu_custom_call.1} parent=11 // pred_check
          %p226 = pneg %p152
        $region30: #{tpu_custom_call.1} parent=11 // pred_check_branch
          %228 = sbr.rel (%p226) target = $region32
        $region31: #{tpu_custom_call.1} parent=11 // pred_region
          %s230 = ssub.s32 8192, 8192
          %231 = vsyncadd [#allocation7], %s230
          %s232 = sshll.u32 [#allocation6], 4
          %s233 = int_to_ptr.vmem [resolvable:$true] %s232
          %238 = dma.hbm_to_vmem [thread:$0]  %s5, 8192, %s233, [#allocation7], 128, 128, 8
        $region32: #{tpu_custom_call.1} parent=11 // pred_fallthru
          _
        // Predicated region
        $region33: #{tpu_custom_call.1} parent=11 // pred_check
          %p239 = pneg %p173
        $region34: #{tpu_custom_call.1} parent=11 // pred_check_branch
          %241 = sbr.rel (%p239) target = $region36
        $region35: #{tpu_custom_call.1} parent=11 // pred_region
          _
        $region36: #{tpu_custom_call.1} parent=11 // pred_fallthru
          _
      $region12: #{tpu_custom_call.1} parent=5 // pred_fallthru
        _
      %p242 = scmp.lt.s32.totalorder %s21, 4
      // Predicated region
      $region37: #{tpu_custom_call.1} parent=5 // pred_check
        %p243 = pneg %p242
      $region38: #{tpu_custom_call.1} parent=5 // pred_check_branch
        %245 = sbr.rel (%p243) target = $region40
      $region39: #{tpu_custom_call.1} parent=5 // pred_region
        // Predicated region
        $region41: #{tpu_custom_call.1} parent=39 // pred_check
          %p246 = pneg %p41
        $region42: #{tpu_custom_call.1} parent=39 // pred_check_branch
          %248 = sbr.rel (%p246) target = $region44
        $region43: #{tpu_custom_call.1} parent=39 // pred_region
          %s249 = sand.u32 %s31, 1
          %s250 = scalar_lea.sflag [#allocation4], %s249
          %s251 = sand.u32 %s31, 1
          %s252 = smul.addr %s251, 128
          %s253 = scalar_lea.vmem [#allocation3], %s252
          %s254 = smul.u32 2, %s21
          %s256 = ssub.s32 2048, 2048
          %257 = vsyncadd %s250, %s256
          %s258 = smul.addr %s254, 8
          %s259 = smul.addr %s258, 128
          %s260 = scalar_lea.hbm %s0, %s259
          %s261 = sshll.u32 %s253, 4
          %s262 = int_to_ptr.vmem [resolvable:$true] %s261
          %267 = dma.hbm_to_vmem [thread:$0]  %s260, 2048, %s262, %s250, 256, 256, 16
        $region44: #{tpu_custom_call.1} parent=39 // pred_fallthru
          _
      $region40: #{tpu_custom_call.1} parent=5 // pred_fallthru
        _
      %p268 = scmp.le.s32.totalorder 1, %s21
      %p269 = scmp.lt.s32.totalorder %s21, 5
      %p270 = pnand %p268, %p269
      %p271 = pneg %p270
      // Predicated region
      $region45: #{tpu_custom_call.1} parent=5 // pred_check
        _
      $region46: #{tpu_custom_call.1} parent=5 // pred_check_branch
        %273 = sbr.rel (%p270) target = $region48
      $region47: #{tpu_custom_call.1} parent=5 // pred_region
        %s274 = ssub.s32 %s21, 1
        %s275 = sand.u32 %s34, 1
        %s276 = scalar_lea.sflag [#allocation4], %s275
        %s277 = sand.u32 %s34, 1
        %s278 = smul.addr %s277, 128
        %s279 = scalar_lea.vmem [#allocation3], %s278
        // Predicated region
        $region49: #{tpu_custom_call.1} parent=47 // pred_check
          %p280 = pneg %p47
        $region50: #{tpu_custom_call.1} parent=47 // pred_check_branch
          %282 = sbr.rel (%p280) target = $region52
        $region51: #{tpu_custom_call.1} parent=47 // pred_region
          %283 = dma.done %s276, 2048
        $region52: #{tpu_custom_call.1} parent=47 // pred_fallthru
          _
        // Predicated region
        $region53: #{tpu_custom_call.1} parent=47 // pred_check
          %p284 = pneg %p152
        $region54: #{tpu_custom_call.1} parent=47 // pred_check_branch
          %286 = sbr.rel (%p284) target = $region56
        $region55: #{tpu_custom_call.1} parent=47 // pred_region
          %287 = dma.done [#allocation7], 8192
        $region56: #{tpu_custom_call.1} parent=47 // pred_fallthru
          _
        %s288 = sand.u32 %s34, 1
        %s289 = scalar_lea.sflag [#allocation4], %s288
        %s290 = sand.u32 %s34, 1
        %s291 = smul.addr %s290, 128
        %s292 = scalar_lea.vmem [#allocation3], %s291
        %p293 = pneg %p47
        %p294 = pneg %p44
        %p295 = pneg %p68
        %p296 = pneg %p65
        %p297 = pneg %p89
        %p298 = pneg %p86
        %p299 = pneg %p110
        %p300 = pneg %p107
        %p301 = pneg %p131
        %p302 = pneg %p128
        %p303 = pneg %p152
        %p304 = pneg %p149
        %p305 = pneg %p173
        %p306 = pneg %p170
        %p307 = pneg %p199
        %p308 = pneg %p196
        %s309 = sand.u32 %s186, 1
        %s310 = scalar_lea.sflag [#allocation5], %s309
        %s311 = sand.u32 %s186, 1
        %s312 = smul.addr %s311, 128
        %s313 = scalar_lea.vmem [#allocation8], %s312
        %s314 = smul.u32 2, %s26
        %s315 = smul.u32 2, %s26
        %v316 = vld [vmem:[%s279] sm:$0xff]
        %v317 = vld [vmem:[%s279 + $0x8] sm:$0xff]
        %v318 = vld [vmem:[%s279 + $0x10] sm:$0xff]
        %v319 = vld [vmem:[%s279 + $0x18] sm:$0xff]
        %v320 = vld [vmem:[%s279 + $0x20] sm:$0xff]
        %v321 = vld [vmem:[%s279 + $0x28] sm:$0xff]
        %v322 = vld [vmem:[%s279 + $0x30] sm:$0xff]
        %v323 = vld [vmem:[%s279 + $0x38] sm:$0xff]
        %v324 = vld [vmem:[%s279 + $0x40] sm:$0xff]
        %v325 = vld [vmem:[%s279 + $0x48] sm:$0xff]
        %v326 = vld [vmem:[%s279 + $0x50] sm:$0xff]
        %v327 = vld [vmem:[%s279 + $0x58] sm:$0xff]
        %v328 = vld [vmem:[%s279 + $0x60] sm:$0xff]
        %v329 = vld [vmem:[%s279 + $0x68] sm:$0xff]
        %v330 = vld [vmem:[%s279 + $0x70] sm:$0xff]
        %v331 = vld [vmem:[%s279 + $0x78] sm:$0xff]
        %v332 = vadd.f32 %v316, %v317
        %333 = vadd.xlane.f32.xlu0 %v332
        %v334 = vpop.xlane.xlu0 %333
        %v335 = vadd.f32 %v318, %v319
        %336 = vadd.xlane.f32.xlu0 %v335
        %v337 = vpop.xlane.xlu0 %336
        %v338 = vadd.f32 %v320, %v321
        %339 = vadd.xlane.f32.xlu0 %v338
        %v340 = vpop.xlane.xlu0 %339
        %v341 = vadd.f32 %v322, %v323
        %342 = vadd.xlane.f32.xlu0 %v341
        %v343 = vpop.xlane.xlu0 %342
        %v344 = vadd.f32 %v324, %v325
        %345 = vadd.xlane.f32.xlu0 %v344
        %v346 = vpop.xlane.xlu0 %345
        %v347 = vadd.f32 %v326, %v327
        %348 = vadd.xlane.f32.xlu0 %v347
        %v349 = vpop.xlane.xlu0 %348
        %v350 = vadd.f32 %v328, %v329
        %351 = vadd.xlane.f32.xlu0 %v350
        %v352 = vpop.xlane.xlu0 %351
        %v353 = vadd.f32 %v330, %v331
        %354 = vadd.xlane.f32.xlu0 %v353
        %v355 = vpop.xlane.xlu0 %354
        %v356 = vrcp.pop 256.0
        %v357 = vmul.f32 %v334, %v356
        %v358 = vmul.f32 %v337, %v356
        %v359 = vmul.f32 %v340, %v356
        %v360 = vmul.f32 %v343, %v356
        %v361 = vmul.f32 %v346, %v356
        %v362 = vmul.f32 %v349, %v356
        %v363 = vmul.f32 %v352, %v356
        %v364 = vmul.f32 %v355, %v356
        %v365 = vmax.f32 %v316, %v317
        %366 = vmax.xlane.f32.xlu0 %v365
        %v367 = vpop.xlane.xlu0 %366
        %v368 = vmax.f32 %v318, %v319
        %369 = vmax.xlane.f32.xlu0 %v368
        %v370 = vpop.xlane.xlu0 %369
        %v371 = vmax.f32 %v320, %v321
        %372 = vmax.xlane.f32.xlu0 %v371
        %v373 = vpop.xlane.xlu0 %372
        %v374 = vmax.f32 %v322, %v323
        %375 = vmax.xlane.f32.xlu0 %v374
        %v376 = vpop.xlane.xlu0 %375
        %v377 = vmax.f32 %v324, %v325
        %378 = vmax.xlane.f32.xlu0 %v377
        %v379 = vpop.xlane.xlu0 %378
        %v380 = vmax.f32 %v326, %v327
        %381 = vmax.xlane.f32.xlu0 %v380
        %v382 = vpop.xlane.xlu0 %381
        %v383 = vmax.f32 %v328, %v329
        %384 = vmax.xlane.f32.xlu0 %v383
        %v385 = vpop.xlane.xlu0 %384
        %v386 = vmax.f32 %v330, %v331
        %387 = vmax.xlane.f32.xlu0 %v386
        %v388 = vpop.xlane.xlu0 %387
        %v397 = vlaneseq
        %v398 = vand.u32 %v397, 127
        %v399 = vlaneseq
        %v400 = vshrl.u32 %v399, 7
        %v401 = vsub.s32 %v398, %v400
        %v402 = vrot.slane %v357, %v401
        %v403 = vadd.s32 %v398, 4294967288
        %v404 = vlaneseq
        %v405 = vshrl.u32 %v404, 7
        %v406 = vsub.s32 %v403, %v405
        %v407 = vrot.slane %v358, %v406
        %vm408 = vcmask 130112
        %v409 = vsel %vm408, %v407, %v402
        %v410 = vadd.s32 %v398, 4294967280
        %v411 = vlaneseq
        %v412 = vshrl.u32 %v411, 7
        %v413 = vsub.s32 %v410, %v412
        %v414 = vrot.slane %v359, %v413
        %vm415 = vcmask 195712
        %v416 = vsel %vm415, %v414, %v409
        %v417 = vadd.s32 %v398, 4294967272
        %v418 = vlaneseq
        %v419 = vshrl.u32 %v418, 7
        %v420 = vsub.s32 %v417, %v419
        %v421 = vrot.slane %v360, %v420
        %vm422 = vcmask 261312
        %v423 = vsel %vm422, %v421, %v416
        %v424 = vlaneseq
        %v425 = vshrl.u32 %v424, 7
        %v426 = vsub.s32 %v398, %v425
        %v427 = vrot.slane %v361, %v426
        %v428 = vlaneseq
        %v429 = vshrl.u32 %v428, 7
        %v430 = vsub.s32 %v403, %v429
        %v431 = vrot.slane %v362, %v430
        %v432 = vsel %vm408, %v431, %v427
        %v433 = vlaneseq
        %v434 = vshrl.u32 %v433, 7
        %v435 = vsub.s32 %v410, %v434
        %v436 = vrot.slane %v363, %v435
        %v437 = vsel %vm415, %v436, %v432
        %v438 = vlaneseq
        %v439 = vshrl.u32 %v438, 7
        %v440 = vsub.s32 %v417, %v439
        %v441 = vrot.slane %v364, %v440
        %v442 = vsel %vm422, %v441, %v437
        %vm443 = vcmask 1041409
        %v444 = vsel %vm443, %v442, %v423
        %v454 = vlaneseq
        %v455 = vshrl.u32 %v454, 7
        %v456 = vsub.s32 %v398, %v455
        %v457 = vrot.slane %v367, %v456
        %v458 = vlaneseq
        %v459 = vshrl.u32 %v458, 7
        %v460 = vsub.s32 %v403, %v459
        %v461 = vrot.slane %v370, %v460
        %v462 = vsel %vm408, %v461, %v457
        %v463 = vlaneseq
        %v464 = vshrl.u32 %v463, 7
        %v465 = vsub.s32 %v410, %v464
        %v466 = vrot.slane %v373, %v465
        %v467 = vsel %vm415, %v466, %v462
        %v468 = vlaneseq
        %v469 = vshrl.u32 %v468, 7
        %v470 = vsub.s32 %v417, %v469
        %v471 = vrot.slane %v376, %v470
        %v472 = vsel %vm422, %v471, %v467
        %v473 = vlaneseq
        %v474 = vshrl.u32 %v473, 7
        %v475 = vsub.s32 %v398, %v474
        %v476 = vrot.slane %v379, %v475
        %v477 = vlaneseq
        %v478 = vshrl.u32 %v477, 7
        %v479 = vsub.s32 %v403, %v478
        %v480 = vrot.slane %v382, %v479
        %v481 = vsel %vm408, %v480, %v476
        %v482 = vlaneseq
        %v483 = vshrl.u32 %v482, 7
        %v484 = vsub.s32 %v410, %v483
        %v485 = vrot.slane %v385, %v484
        %v486 = vsel %vm415, %v485, %v481
        %v487 = vlaneseq
        %v488 = vshrl.u32 %v487, 7
        %v489 = vsub.s32 %v417, %v488
        %v490 = vrot.slane %v388, %v489
        %v491 = vsel %vm422, %v490, %v486
        %vm492 = vcmask 1043459
        %v493 = vsel %vm492, %v491, %v472
        %vm495 = vcmask 1041408
        %v496 = vsel %vm495, %v444, %v493
        %v497 = vld [vmem:[%s1] sm:$0xff]
        %v498 = vld [vmem:[%s1 + $0x8] sm:$0xff]
        %v499 = vld [vmem:[%s1 + $0x10] sm:$0xff]
        %v500 = vld [vmem:[%s1 + $0x18] sm:$0xff]
        %v501 = vld [vmem:[%s2] sm:$0x1]
        %v503 = vlaneseq
        %v504 = vshrl.u32 %v503, 7
        %v505 = vsub.s32 0, %v504
        %v506 = vrot.slane %v501, %v505
        %vm508 = vcmask 261120
        %v510 = vsel %vm508, %v496, 0
        %512 = vmatprep.subr.mxu0 0.0
        %513 = vmatpush1.msra.mxu0 0.0
        %514 = vmatprep.subr.mxu0 0.0
        %515 = vmatpush1.msra.mxu0 0.0
        %516 = vmatprep.subr.mxu0 0.0
        %517 = vmatpush1.msra.mxu0 0.0
        %518 = vmatprep.subr.mxu0 0.0
        %519 = vmatpush1.msra.mxu0 0.0
        %520 = vmatprep.subr.mxu0 0.0
        %521 = vmatpush1.msra.mxu0 0.0
        %522 = vmatprep.subr.mxu0 0.0
        %523 = vmatpush1.msra.mxu0 0.0
        %524 = vmatprep.subr.mxu0 0.0
        %525 = vmatpush1.msra.mxu0 0.0
        %526 = vmatprep.subr.mxu0 0.0
        %527 = vmatpush1.msra.mxu0 0.0
        %528 = vmatprep.subr.mxu0 0.0
        %529 = vmatpush1.msra.mxu0 0.0
        %530 = vmatprep.subr.mxu0 0.0
        %531 = vmatpush1.msra.mxu0 0.0
        %532 = vmatprep.subr.mxu0 0.0
        %533 = vmatpush1.msra.mxu0 0.0
        %534 = vmatprep.subr.mxu0 0.0
        %535 = vmatpush1.msra.mxu0 0.0
        %536 = vmatprep.subr.mxu0 0.0
        %537 = vmatpush1.msra.mxu0 %v500
        %538 = vmatprep.subr.mxu0 0.0
        %539 = vmatpush1.msra.mxu0 %v499
        %540 = vmatprep.subr.mxu0 0.0
        %541 = vmatpush1.msra.mxu0 %v498
        %542 = vmatprep.subr.mxu0 0.0
        %543 = vmatpush1.msra.mxu0 %v497
        %544 = vmatprep.subr.mxu0 0.0
        %545 = vmatpush2.msra.mxu0 0.0
        %546 = vmatprep.subr.mxu0 0.0
        %547 = vmatpush2.msra.mxu0 0.0
        %548 = vmatprep.subr.mxu0 0.0
        %549 = vmatpush2.msra.mxu0 0.0
        %550 = vmatprep.subr.mxu0 0.0
        %551 = vmatpush2.msra.mxu0 0.0
        %552 = vmatprep.subr.mxu0 0.0
        %553 = vmatpush2.msra.mxu0 0.0
        %554 = vmatprep.subr.mxu0 0.0
        %555 = vmatpush2.msra.mxu0 0.0
        %556 = vmatprep.subr.mxu0 0.0
        %557 = vmatpush2.msra.mxu0 0.0
        %558 = vmatprep.subr.mxu0 0.0
        %559 = vmatpush2.msra.mxu0 0.0
        %560 = vmatprep.subr.mxu0 0.0
        %561 = vmatpush2.msra.mxu0 0.0
        %562 = vmatprep.subr.mxu0 0.0
        %563 = vmatpush2.msra.mxu0 0.0
        %564 = vmatprep.subr.mxu0 0.0
        %565 = vmatpush2.msra.mxu0 0.0
        %566 = vmatprep.subr.mxu0 0.0
        %567 = vmatpush2.msra.mxu0 0.0
        %568 = vmatprep.subr.mxu0 0.0
        %569 = vmatpush2.msra.mxu0 0.0
        %570 = vmatprep.subr.mxu0 0.0
        %571 = vmatpush2.msra.mxu0 0.0
        %572 = vmatprep.subr.mxu0 0.0
        %573 = vmatpush2.msra.mxu0 0.0
        %574 = vmatprep.subr.mxu0 0.0
        %575 = vmatpush2.msra.mxu0 0.0
        %576 = vmatprep.mubr.f32.mxu0 0.0
        %577 = vmatmul.mubr.f32.gmra.mxu0 %v510
        %v578 = vpop.f32.mrf.mxu0
        %v579 = vadd.f32 %v506, %v578
        %v580 = vpop.f32.mrf.mxu0
        %581 = vdwg.mxu0
        %v582 = vmax.f32 %v579, 0.0
        %v583 = vld [vmem:[%s3] sm:$0x3]
        %v584 = vld [vmem:[%s4] sm:$0x1]
        %v586 = vlaneseq
        %v587 = vshrl.u32 %v586, 7
        %v588 = vsub.s32 0, %v587
        %v589 = vrot.slane %v584, %v588
        %vm591 = vcmask 15360
        %v593 = vsel %vm591, %v582, 0
        %v596 = vsel %vm495, %v583, 0
        %598 = vmatprep.subr.mxu0 0.0
        %599 = vmatpush1.msra.mxu0 0.0
        %600 = vmatprep.subr.mxu0 0.0
        %601 = vmatpush1.msra.mxu0 0.0
        %602 = vmatprep.subr.mxu0 0.0
        %603 = vmatpush1.msra.mxu0 0.0
        %604 = vmatprep.subr.mxu0 0.0
        %605 = vmatpush1.msra.mxu0 0.0
        %606 = vmatprep.subr.mxu0 0.0
        %607 = vmatpush1.msra.mxu0 0.0
        %608 = vmatprep.subr.mxu0 0.0
        %609 = vmatpush1.msra.mxu0 0.0
        %610 = vmatprep.subr.mxu0 0.0
        %611 = vmatpush1.msra.mxu0 0.0
        %612 = vmatprep.subr.mxu0 0.0
        %613 = vmatpush1.msra.mxu0 0.0
        %614 = vmatprep.subr.mxu0 0.0
        %615 = vmatpush1.msra.mxu0 0.0
        %616 = vmatprep.subr.mxu0 0.0
        %617 = vmatpush1.msra.mxu0 0.0
        %618 = vmatprep.subr.mxu0 0.0
        %619 = vmatpush1.msra.mxu0 0.0
        %620 = vmatprep.subr.mxu0 0.0
        %621 = vmatpush1.msra.mxu0 0.0
        %622 = vmatprep.subr.mxu0 0.0
        %623 = vmatpush1.msra.mxu0 0.0
        %624 = vmatprep.subr.mxu0 0.0
        %625 = vmatpush1.msra.mxu0 0.0
        %626 = vmatprep.subr.mxu0 0.0
        %627 = vmatpush1.msra.mxu0 0.0
        %628 = vmatprep.subr.mxu0 0.0
        %629 = vmatpush1.msra.mxu0 %v596
        %630 = vmatprep.subr.mxu0 0.0
        %631 = vmatpush2.msra.mxu0 0.0
        %632 = vmatprep.subr.mxu0 0.0
        %633 = vmatpush2.msra.mxu0 0.0
        %634 = vmatprep.subr.mxu0 0.0
        %635 = vmatpush2.msra.mxu0 0.0
        %636 = vmatprep.subr.mxu0 0.0
        %637 = vmatpush2.msra.mxu0 0.0
        %638 = vmatprep.subr.mxu0 0.0
        %639 = vmatpush2.msra.mxu0 0.0
        %640 = vmatprep.subr.mxu0 0.0
        %641 = vmatpush2.msra.mxu0 0.0
        %642 = vmatprep.subr.mxu0 0.0
        %643 = vmatpush2.msra.mxu0 0.0
        %644 = vmatprep.subr.mxu0 0.0
        %645 = vmatpush2.msra.mxu0 0.0
        %646 = vmatprep.subr.mxu0 0.0
        %647 = vmatpush2.msra.mxu0 0.0
        %648 = vmatprep.subr.mxu0 0.0
        %649 = vmatpush2.msra.mxu0 0.0
        %650 = vmatprep.subr.mxu0 0.0
        %651 = vmatpush2.msra.mxu0 0.0
        %652 = vmatprep.subr.mxu0 0.0
        %653 = vmatpush2.msra.mxu0 0.0
        %654 = vmatprep.subr.mxu0 0.0
        %655 = vmatpush2.msra.mxu0 0.0
        %656 = vmatprep.subr.mxu0 0.0
        %657 = vmatpush2.msra.mxu0 0.0
        %658 = vmatprep.subr.mxu0 0.0
        %659 = vmatpush2.msra.mxu0 0.0
        %660 = vmatprep.subr.mxu0 0.0
        %661 = vmatpush2.msra.mxu0 0.0
        %662 = vmatprep.mubr.f32.mxu0 0.0
        %663 = vmatmul.mubr.f32.gmra.mxu0 %v593
        %v664 = vpop.f32.mrf.mxu0
        %v665 = vadd.f32 %v589, %v664
        %v666 = vpop.f32.mrf.mxu0
        %667 = vdwg.mxu0
        %v669 = vrot.slane %v665, 2
        %v671 = vadd.f32 %v665, %v669
        %v672 = vxor.u32 %v671, 2147483648
        %v673 = vmul.f32 %v672, 1.442695
        %v674 = vpow.pop %v673
        %v675 = vadd.f32 %v674, 1.0
        %v676 = vrcp.pop %v675
        %v677 = vmul.f32 1.0, %v676
        %v678 = vlaneseq
        %v679 = vshrl.u32 %v678, 7
        %v680 = vsub.s32 0, %v679
        %v681 = vrot.slane %v677, %v680
        %683 = vbcast.lane.b32.xlu0 %v681, 256
        %v684 = vpop.permute.xlu0 %683
        %s686 = sor.u32 256, 8
        %687 = vbcast.lane.b32.xlu0 %v681, %s686
        %v688 = vpop.permute.xlu0 %687
        %s690 = sor.u32 256, 16
        %691 = vbcast.lane.b32.xlu0 %v681, %s690
        %v692 = vpop.permute.xlu0 %691
        %s694 = sor.u32 256, 24
        %695 = vbcast.lane.b32.xlu0 %v681, %s694
        %v696 = vpop.permute.xlu0 %695
        %v697 = vlaneseq
        %v698 = vshrl.u32 %v697, 7
        %v699 = vsub.s32 1, %v698
        %v700 = vrot.slane %v677, %v699
        %702 = vbcast.lane.b32.xlu0 %v700, 256
        %v703 = vpop.permute.xlu0 %702
        %s705 = sor.u32 256, 8
        %706 = vbcast.lane.b32.xlu0 %v700, %s705
        %v707 = vpop.permute.xlu0 %706
        %s709 = sor.u32 256, 16
        %710 = vbcast.lane.b32.xlu0 %v700, %s709
        %v711 = vpop.permute.xlu0 %710
        %s713 = sor.u32 256, 24
        %714 = vbcast.lane.b32.xlu0 %v700, %s713
        %v715 = vpop.permute.xlu0 %714
        %v716 = vmul.f32 %v316, %v684
        %v717 = vmul.f32 %v317, %v684
        %v718 = vmul.f32 %v318, %v688
        %v719 = vmul.f32 %v319, %v688
        %v720 = vmul.f32 %v320, %v692
        %v721 = vmul.f32 %v321, %v692
        %v722 = vmul.f32 %v322, %v696
        %v723 = vmul.f32 %v323, %v696
        %v724 = vmul.f32 %v324, %v703
        %v725 = vmul.f32 %v325, %v703
        %v726 = vmul.f32 %v326, %v707
        %v727 = vmul.f32 %v327, %v707
        %v728 = vmul.f32 %v328, %v711
        %v729 = vmul.f32 %v329, %v711
        %v730 = vmul.f32 %v330, %v715
        %v731 = vmul.f32 %v331, %v715
        %v732 = vadd.f32 %v716, %v718
        %v733 = vadd.f32 %v732, %v720
        %v734 = vadd.f32 %v733, %v722
        %v735 = vrot.slane %v734, 4
        %v736 = vadd.f32 %v734, %v735
        %v737 = vrot.slane %v736, 2
        %v738 = vadd.f32 %v736, %v737
        %v739 = vrot.slane %v738, 1
        %v740 = vadd.f32 %v738, %v739
        %v741 = vadd.f32 %v717, %v719
        %v742 = vadd.f32 %v741, %v721
        %v743 = vadd.f32 %v742, %v723
        %v744 = vrot.slane %v743, 4
        %v745 = vadd.f32 %v743, %v744
        %v746 = vrot.slane %v745, 2
        %v747 = vadd.f32 %v745, %v746
        %v748 = vrot.slane %v747, 1
        %v749 = vadd.f32 %v747, %v748
        %v750 = vadd.f32 %v724, %v726
        %v751 = vadd.f32 %v750, %v728
        %v752 = vadd.f32 %v751, %v730
        %v753 = vrot.slane %v752, 4
        %v754 = vadd.f32 %v752, %v753
        %v755 = vrot.slane %v754, 2
        %v756 = vadd.f32 %v754, %v755
        %v757 = vrot.slane %v756, 1
        %v758 = vadd.f32 %v756, %v757
        %v759 = vadd.f32 %v725, %v727
        %v760 = vadd.f32 %v759, %v729
        %v761 = vadd.f32 %v760, %v731
        %v762 = vrot.slane %v761, 4
        %v763 = vadd.f32 %v761, %v762
        %v764 = vrot.slane %v763, 2
        %v765 = vadd.f32 %v763, %v764
        %v766 = vrot.slane %v765, 1
        %v767 = vadd.f32 %v765, %v766
        %v768 = vrcp.pop 32.0
        %v769 = vmul.f32 %v740, %v768
        %v770 = vmul.f32 %v749, %v768
        %v771 = vmul.f32 %v758, %v768
        %v772 = vmul.f32 %v767, %v768
        %v773 = vmax.f32 %v716, %v718
        %v774 = vmax.f32 %v773, %v720
        %v775 = vmax.f32 %v774, %v722
        %v776 = vrot.slane %v775, 4
        %v777 = vmax.f32 %v775, %v776
        %v778 = vrot.slane %v777, 2
        %v779 = vmax.f32 %v777, %v778
        %v780 = vrot.slane %v779, 1
        %v781 = vmax.f32 %v779, %v780
        %v782 = vmax.f32 %v717, %v719
        %v783 = vmax.f32 %v782, %v721
        %v784 = vmax.f32 %v783, %v723
        %v785 = vrot.slane %v784, 4
        %v786 = vmax.f32 %v784, %v785
        %v787 = vrot.slane %v786, 2
        %v788 = vmax.f32 %v786, %v787
        %v789 = vrot.slane %v788, 1
        %v790 = vmax.f32 %v788, %v789
        %v791 = vmax.f32 %v724, %v726
        %v792 = vmax.f32 %v791, %v728
        %v793 = vmax.f32 %v792, %v730
        %v794 = vrot.slane %v793, 4
        %v795 = vmax.f32 %v793, %v794
        %v796 = vrot.slane %v795, 2
        %v797 = vmax.f32 %v795, %v796
        %v798 = vrot.slane %v797, 1
        %v799 = vmax.f32 %v797, %v798
        %v800 = vmax.f32 %v725, %v727
        %v801 = vmax.f32 %v800, %v729
        %v802 = vmax.f32 %v801, %v731
        %v803 = vrot.slane %v802, 4
        %v804 = vmax.f32 %v802, %v803
        %v805 = vrot.slane %v804, 2
        %v806 = vmax.f32 %v804, %v805
        %v807 = vrot.slane %v806, 1
        %v808 = vmax.f32 %v806, %v807
        %809 = vst [vmem:[%s313] sm:$0xff] %v716
        %810 = vst [vmem:[%s313 + $0x8] sm:$0xff] %v717
        %811 = vst [vmem:[%s313 + $0x10] sm:$0xff] %v718
        %812 = vst [vmem:[%s313 + $0x18] sm:$0xff] %v719
        %813 = vst [vmem:[%s313 + $0x20] sm:$0xff] %v720
        %814 = vst [vmem:[%s313 + $0x28] sm:$0xff] %v721
        %815 = vst [vmem:[%s313 + $0x30] sm:$0xff] %v722
        %816 = vst [vmem:[%s313 + $0x38] sm:$0xff] %v723
        %817 = vst [vmem:[%s313 + $0x40] sm:$0xff] %v724
        %818 = vst [vmem:[%s313 + $0x48] sm:$0xff] %v725
        %819 = vst [vmem:[%s313 + $0x50] sm:$0xff] %v726
        %820 = vst [vmem:[%s313 + $0x58] sm:$0xff] %v727
        %821 = vst [vmem:[%s313 + $0x60] sm:$0xff] %v728
        %822 = vst [vmem:[%s313 + $0x68] sm:$0xff] %v729
        %823 = vst [vmem:[%s313 + $0x70] sm:$0xff] %v730
        %824 = vst [vmem:[%s313 + $0x78] sm:$0xff] %v731
        %v829 = vsel %vm443, %v771, %v769
        %v830 = vsel %vm443, %v772, %v770
        %v837 = vsel %vm443, %v799, %v781
        %v838 = vsel %vm443, %v808, %v790
        %v841 = vpack.c.bf16 %v829, %v829
        %v842 = vpack.c.bf16 %v830, %v830
        %v843 = vpack.c.bf16 %v837, %v837
        %v844 = vpack.c.bf16 %v838, %v838
        %v845 = vld [vmem:[#allocation6] sm:$0xff]
        %v846 = vld [vmem:[#allocation6 + $0x8] sm:$0xff]
        %v847 = vld [vmem:[#allocation6 + $0x10] sm:$0xff]
        %v848 = vld [vmem:[#allocation6 + $0x18] sm:$0xff]
        %v849 = vld [vmem:[#allocation6 + $0x20] sm:$0xff]
        %v850 = vld [vmem:[#allocation6 + $0x28] sm:$0xff]
        %v851 = vld [vmem:[#allocation6 + $0x30] sm:$0xff]
        %v852 = vld [vmem:[#allocation6 + $0x38] sm:$0xff]
        %v853 = vld [vmem:[#allocation6 + $0x40] sm:$0xff]
        %v854 = vld [vmem:[#allocation6 + $0x48] sm:$0xff]
        %v855 = vld [vmem:[#allocation6 + $0x50] sm:$0xff]
        %v856 = vld [vmem:[#allocation6 + $0x58] sm:$0xff]
        %v857 = vld [vmem:[#allocation6 + $0x60] sm:$0xff]
        %v858 = vld [vmem:[#allocation6 + $0x68] sm:$0xff]
        %v859 = vld [vmem:[#allocation6 + $0x70] sm:$0xff]
        %v860 = vld [vmem:[#allocation6 + $0x78] sm:$0xff]
        %v861 = vld [vmem:[#allocation6 + $0x80] sm:$0xff]
        %v862 = vld [vmem:[#allocation6 + $0x88] sm:$0xff]
        %v863 = vld [vmem:[#allocation6 + $0x90] sm:$0xff]
        %v864 = vld [vmem:[#allocation6 + $0x98] sm:$0xff]
        %v865 = vld [vmem:[#allocation6 + $0xa0] sm:$0xff]
        %v866 = vld [vmem:[#allocation6 + $0xa8] sm:$0xff]
        %v867 = vld [vmem:[#allocation6 + $0xb0] sm:$0xff]
        %v868 = vld [vmem:[#allocation6 + $0xb8] sm:$0xff]
        %v869 = vld [vmem:[#allocation6 + $0xc0] sm:$0xff]
        %v870 = vld [vmem:[#allocation6 + $0xc8] sm:$0xff]
        %v871 = vld [vmem:[#allocation6 + $0xd0] sm:$0xff]
        %v872 = vld [vmem:[#allocation6 + $0xd8] sm:$0xff]
        %v873 = vld [vmem:[#allocation6 + $0xe0] sm:$0xff]
        %v874 = vld [vmem:[#allocation6 + $0xe8] sm:$0xff]
        %v875 = vld [vmem:[#allocation6 + $0xf0] sm:$0xff]
        %v876 = vld [vmem:[#allocation6 + $0xf8] sm:$0xff]
        %v877 = vld [vmem:[#allocation6 + $0x100] sm:$0xff]
        %v878 = vld [vmem:[#allocation6 + $0x108] sm:$0xff]
        %v879 = vld [vmem:[#allocation6 + $0x110] sm:$0xff]
        %v880 = vld [vmem:[#allocation6 + $0x118] sm:$0xff]
        %v881 = vld [vmem:[#allocation6 + $0x120] sm:$0xff]
        %v882 = vld [vmem:[#allocation6 + $0x128] sm:$0xff]
        %v883 = vld [vmem:[#allocation6 + $0x130] sm:$0xff]
        %v884 = vld [vmem:[#allocation6 + $0x138] sm:$0xff]
        %v885 = vld [vmem:[#allocation6 + $0x140] sm:$0xff]
        %v886 = vld [vmem:[#allocation6 + $0x148] sm:$0xff]
        %v887 = vld [vmem:[#allocation6 + $0x150] sm:$0xff]
        %v888 = vld [vmem:[#allocation6 + $0x158] sm:$0xff]
        %v889 = vld [vmem:[#allocation6 + $0x160] sm:$0xff]
        %v890 = vld [vmem:[#allocation6 + $0x168] sm:$0xff]
        %v891 = vld [vmem:[#allocation6 + $0x170] sm:$0xff]
        %v892 = vld [vmem:[#allocation6 + $0x178] sm:$0xff]
        %v893 = vld [vmem:[#allocation6 + $0x180] sm:$0xff]
        %v894 = vld [vmem:[#allocation6 + $0x188] sm:$0xff]
        %v895 = vld [vmem:[#allocation6 + $0x190] sm:$0xff]
        %v896 = vld [vmem:[#allocation6 + $0x198] sm:$0xff]
        %v897 = vld [vmem:[#allocation6 + $0x1a0] sm:$0xff]
        %v898 = vld [vmem:[#allocation6 + $0x1a8] sm:$0xff]
        %v899 = vld [vmem:[#allocation6 + $0x1b0] sm:$0xff]
        %v900 = vld [vmem:[#allocation6 + $0x1b8] sm:$0xff]
        %v901 = vld [vmem:[#allocation6 + $0x1c0] sm:$0xff]
        %v902 = vld [vmem:[#allocation6 + $0x1c8] sm:$0xff]
        %v903 = vld [vmem:[#allocation6 + $0x1d0] sm:$0xff]
        %v904 = vld [vmem:[#allocation6 + $0x1d8] sm:$0xff]
        %v905 = vld [vmem:[#allocation6 + $0x1e0] sm:$0xff]
        %v906 = vld [vmem:[#allocation6 + $0x1e8] sm:$0xff]
        %v907 = vld [vmem:[#allocation6 + $0x1f0] sm:$0xff]
        %v908 = vld [vmem:[#allocation6 + $0x1f8] sm:$0xff]
        %s909 = sld [smem:[#allocation2]]
        %v910 = vstv %s909
        %v975 = vunpack.c.l.b16 %v845
        %v976 = vunpack.c.h.b16 %v845
        %v977 = vunpack.c.l.b16 %v846
        %v978 = vunpack.c.h.b16 %v846
        %v979 = vunpack.c.l.b16 %v847
        %v980 = vunpack.c.h.b16 %v847
        %v981 = vunpack.c.l.b16 %v848
        %v982 = vunpack.c.h.b16 %v848
        %v983 = vunpack.c.l.b16 %v849
        %v984 = vunpack.c.h.b16 %v849
        %v985 = vunpack.c.l.b16 %v850
        %v986 = vunpack.c.h.b16 %v850
        %v987 = vunpack.c.l.b16 %v851
        %v988 = vunpack.c.h.b16 %v851
        %v989 = vunpack.c.l.b16 %v852
        %v990 = vunpack.c.h.b16 %v852
        %v991 = vunpack.c.l.b16 %v853
        %v992 = vunpack.c.h.b16 %v853
        %v993 = vunpack.c.l.b16 %v854
        %v994 = vunpack.c.h.b16 %v854
        %v995 = vunpack.c.l.b16 %v855
        %v996 = vunpack.c.h.b16 %v855
        %v997 = vunpack.c.l.b16 %v856
        %v998 = vunpack.c.h.b16 %v856
        %v999 = vunpack.c.l.b16 %v857
        %v1000 = vunpack.c.h.b16 %v857
        %v1001 = vunpack.c.l.b16 %v858
        %v1002 = vunpack.c.h.b16 %v858
        %v1003 = vunpack.c.l.b16 %v859
        %v1004 = vunpack.c.h.b16 %v859
        %v1005 = vunpack.c.l.b16 %v860
        %v1006 = vunpack.c.h.b16 %v860
        %v1007 = vunpack.c.l.b16 %v861
        %v1008 = vunpack.c.h.b16 %v861
        %v1009 = vunpack.c.l.b16 %v862
        %v1010 = vunpack.c.h.b16 %v862
        %v1011 = vunpack.c.l.b16 %v863
        %v1012 = vunpack.c.h.b16 %v863
        %v1013 = vunpack.c.l.b16 %v864
        %v1014 = vunpack.c.h.b16 %v864
        %v1015 = vunpack.c.l.b16 %v865
        %v1016 = vunpack.c.h.b16 %v865
        %v1017 = vunpack.c.l.b16 %v866
        %v1018 = vunpack.c.h.b16 %v866
        %v1019 = vunpack.c.l.b16 %v867
        %v1020 = vunpack.c.h.b16 %v867
        %v1021 = vunpack.c.l.b16 %v868
        %v1022 = vunpack.c.h.b16 %v868
        %v1023 = vunpack.c.l.b16 %v869
        %v1024 = vunpack.c.h.b16 %v869
        %v1025 = vunpack.c.l.b16 %v870
        %v1026 = vunpack.c.h.b16 %v870
        %v1027 = vunpack.c.l.b16 %v871
        %v1028 = vunpack.c.h.b16 %v871
        %v1029 = vunpack.c.l.b16 %v872
        %v1030 = vunpack.c.h.b16 %v872
        %v1031 = vunpack.c.l.b16 %v873
        %v1032 = vunpack.c.h.b16 %v873
        %v1033 = vunpack.c.l.b16 %v874
        %v1034 = vunpack.c.h.b16 %v874
        %v1035 = vunpack.c.l.b16 %v875
        %v1036 = vunpack.c.h.b16 %v875
        %v1037 = vunpack.c.l.b16 %v876
        %v1038 = vunpack.c.h.b16 %v876
        %v1039 = vunpack.c.l.b16 %v877
        %v1040 = vunpack.c.h.b16 %v877
        %v1041 = vunpack.c.l.b16 %v878
        %v1042 = vunpack.c.h.b16 %v878
        %v1043 = vunpack.c.l.b16 %v879
        %v1044 = vunpack.c.h.b16 %v879
        %v1045 = vunpack.c.l.b16 %v880
        %v1046 = vunpack.c.h.b16 %v880
        %v1047 = vunpack.c.l.b16 %v881
        %v1048 = vunpack.c.h.b16 %v881
        %v1049 = vunpack.c.l.b16 %v882
        %v1050 = vunpack.c.h.b16 %v882
        %v1051 = vunpack.c.l.b16 %v883
        %v1052 = vunpack.c.h.b16 %v883
        %v1053 = vunpack.c.l.b16 %v884
        %v1054 = vunpack.c.h.b16 %v884
        %v1055 = vunpack.c.l.b16 %v885
        %v1056 = vunpack.c.h.b16 %v885
        %v1057 = vunpack.c.l.b16 %v886
        %v1058 = vunpack.c.h.b16 %v886
        %v1059 = vunpack.c.l.b16 %v887
        %v1060 = vunpack.c.h.b16 %v887
        %v1061 = vunpack.c.l.b16 %v888
        %v1062 = vunpack.c.h.b16 %v888
        %v1063 = vunpack.c.l.b16 %v889
        %v1064 = vunpack.c.h.b16 %v889
        %v1065 = vunpack.c.l.b16 %v890
        %v1066 = vunpack.c.h.b16 %v890
        %v1067 = vunpack.c.l.b16 %v891
        %v1068 = vunpack.c.h.b16 %v891
        %v1069 = vunpack.c.l.b16 %v892
        %v1070 = vunpack.c.h.b16 %v892
        %v1071 = vunpack.c.l.b16 %v893
        %v1072 = vunpack.c.h.b16 %v893
        %v1073 = vunpack.c.l.b16 %v894
        %v1074 = vunpack.c.h.b16 %v894
        %v1075 = vunpack.c.l.b16 %v895
        %v1076 = vunpack.c.h.b16 %v895
        %v1077 = vunpack.c.l.b16 %v896
        %v1078 = vunpack.c.h.b16 %v896
        %v1079 = vunpack.c.l.b16 %v897
        %v1080 = vunpack.c.h.b16 %v897
        %v1081 = vunpack.c.l.b16 %v898
        %v1082 = vunpack.c.h.b16 %v898
        %v1083 = vunpack.c.l.b16 %v899
        %v1084 = vunpack.c.h.b16 %v899
        %v1085 = vunpack.c.l.b16 %v900
        %v1086 = vunpack.c.h.b16 %v900
        %v1087 = vunpack.c.l.b16 %v901
        %v1088 = vunpack.c.h.b16 %v901
        %v1089 = vunpack.c.l.b16 %v902
        %v1090 = vunpack.c.h.b16 %v902
        %v1091 = vunpack.c.l.b16 %v903
        %v1092 = vunpack.c.h.b16 %v903
        %v1093 = vunpack.c.l.b16 %v904
        %v1094 = vunpack.c.h.b16 %v904
        %v1095 = vunpack.c.l.b16 %v905
        %v1096 = vunpack.c.h.b16 %v905
        %v1097 = vunpack.c.l.b16 %v906
        %v1098 = vunpack.c.h.b16 %v906
        %v1099 = vunpack.c.l.b16 %v907
        %v1100 = vunpack.c.h.b16 %v907
        %v1101 = vunpack.c.l.b16 %v908
        %v1102 = vunpack.c.h.b16 %v908
        %v1103 = vpack.c.b16 %v977, %v975
        %v1104 = vpack.c.b16 %v978, %v976
        %v1105 = vpack.c.b16 %v981, %v979
        %v1106 = vpack.c.b16 %v982, %v980
        %v1107 = vpack.c.b16 %v985, %v983
        %v1108 = vpack.c.b16 %v986, %v984
        %v1109 = vpack.c.b16 %v989, %v987
        %v1110 = vpack.c.b16 %v990, %v988
        %v1111 = vpack.c.b16 %v993, %v991
        %v1112 = vpack.c.b16 %v994, %v992
        %v1113 = vpack.c.b16 %v997, %v995
        %v1114 = vpack.c.b16 %v998, %v996
        %v1115 = vpack.c.b16 %v1001, %v999
        %v1116 = vpack.c.b16 %v1002, %v1000
        %v1117 = vpack.c.b16 %v1005, %v1003
        %v1118 = vpack.c.b16 %v1006, %v1004
        %v1119 = vpack.c.b16 %v1009, %v1007
        %v1120 = vpack.c.b16 %v1010, %v1008
        %v1121 = vpack.c.b16 %v1013, %v1011
        %v1122 = vpack.c.b16 %v1014, %v1012
        %v1123 = vpack.c.b16 %v1017, %v1015
        %v1124 = vpack.c.b16 %v1018, %v1016
        %v1125 = vpack.c.b16 %v1021, %v1019
        %v1126 = vpack.c.b16 %v1022, %v1020
        %v1127 = vpack.c.b16 %v1025, %v1023
        %v1128 = vpack.c.b16 %v1026, %v1024
        %v1129 = vpack.c.b16 %v1029, %v1027
        %v1130 = vpack.c.b16 %v1030, %v1028
        %v1131 = vpack.c.b16 %v1033, %v1031
        %v1132 = vpack.c.b16 %v1034, %v1032
        %v1133 = vpack.c.b16 %v1037, %v1035
        %v1134 = vpack.c.b16 %v1038, %v1036
        %v1135 = vpack.c.b16 %v1041, %v1039
        %v1136 = vpack.c.b16 %v1042, %v1040
        %v1137 = vpack.c.b16 %v1045, %v1043
        %v1138 = vpack.c.b16 %v1046, %v1044
        %v1139 = vpack.c.b16 %v1049, %v1047
        %v1140 = vpack.c.b16 %v1050, %v1048
        %v1141 = vpack.c.b16 %v1053, %v1051
        %v1142 = vpack.c.b16 %v1054, %v1052
        %v1143 = vpack.c.b16 %v1057, %v1055
        %v1144 = vpack.c.b16 %v1058, %v1056
        %v1145 = vpack.c.b16 %v1061, %v1059
        %v1146 = vpack.c.b16 %v1062, %v1060
        %v1147 = vpack.c.b16 %v1065, %v1063
        %v1148 = vpack.c.b16 %v1066, %v1064
        %v1149 = vpack.c.b16 %v1069, %v1067
        %v1150 = vpack.c.b16 %v1070, %v1068
        %v1151 = vpack.c.b16 %v1073, %v1071
        %v1152 = vpack.c.b16 %v1074, %v1072
        %v1153 = vpack.c.b16 %v1077, %v1075
        %v1154 = vpack.c.b16 %v1078, %v1076
        %v1155 = vpack.c.b16 %v1081, %v1079
        %v1156 = vpack.c.b16 %v1082, %v1080
        %v1157 = vpack.c.b16 %v1085, %v1083
        %v1158 = vpack.c.b16 %v1086, %v1084
        %v1159 = vpack.c.b16 %v1089, %v1087
        %v1160 = vpack.c.b16 %v1090, %v1088
        %v1161 = vpack.c.b16 %v1093, %v1091
        %v1162 = vpack.c.b16 %v1094, %v1092
        %v1163 = vpack.c.b16 %v1097, %v1095
        %v1164 = vpack.c.b16 %v1098, %v1096
        %v1165 = vpack.c.b16 %v1101, %v1099
        %v1166 = vpack.c.b16 %v1102, %v1100
        %1231 = vmatprep.subr.bf16.mxu0 %v1118
        %1232 = vmatpush1.bf16.msra.mxu0 %v1117
        %1233 = vmatprep.subr.bf16.mxu0 %v1116
        %1234 = vmatpush1.bf16.msra.mxu0 %v1115
        %1235 = vmatprep.subr.bf16.mxu0 %v1114
        %1236 = vmatpush1.bf16.msra.mxu0 %v1113
        %1237 = vmatprep.subr.bf16.mxu0 %v1112
        %1238 = vmatpush1.bf16.msra.mxu0 %v1111
        %1239 = vmatprep.subr.bf16.mxu0 %v1110
        %1240 = vmatpush1.bf16.msra.mxu0 %v1109
        %1241 = vmatprep.subr.bf16.mxu0 %v1108
        %1242 = vmatpush1.bf16.msra.mxu0 %v1107
        %1243 = vmatprep.subr.bf16.mxu0 %v1106
        %1244 = vmatpush1.bf16.msra.mxu0 %v1105
        %1245 = vmatprep.subr.bf16.mxu0 %v1104
        %1246 = vmatpush1.bf16.msra.mxu0 %v1103
        %1247 = vmatprep.subr.bf16.mxu0 %v1134
        %1248 = vmatpush2.bf16.msra.mxu0 %v1133
        %1249 = vmatprep.subr.bf16.mxu0 %v1132
        %1250 = vmatpush2.bf16.msra.mxu0 %v1131
        %1251 = vmatprep.subr.bf16.mxu0 %v1130
        %1252 = vmatpush2.bf16.msra.mxu0 %v1129
        %1253 = vmatprep.subr.bf16.mxu0 %v1128
        %1254 = vmatpush2.bf16.msra.mxu0 %v1127
        %1255 = vmatprep.subr.bf16.mxu0 %v1126
        %1256 = vmatpush2.bf16.msra.mxu0 %v1125
        %1257 = vmatprep.subr.bf16.mxu0 %v1124
        %1258 = vmatpush2.bf16.msra.mxu0 %v1123
        %1259 = vmatprep.subr.bf16.mxu0 %v1122
        %1260 = vmatpush2.bf16.msra.mxu0 %v1121
        %1261 = vmatprep.subr.bf16.mxu0 %v1120
        %1262 = vmatpush2.bf16.msra.mxu0 %v1119
        %1263 = vmatprep.mubr.bf16.mxu0 %v842
        %1264 = vmatmul.mubr.bf16.gmra.mxu0 %v841
        %v1265 = vpop.f32.mrf.mxu0
        %v1266 = vadd.f32 %v910, %v1265
        %v1267 = vpop.f32.mrf.mxu0
        %v1268 = vadd.f32 %v910, %v1267
        %v1269 = vpop.f32.mrf.mxu0
        %v1270 = vpop.f32.mrf.mxu0
        %1271 = vdwg.mxu0
        %1272 = vmatprep.subr.bf16.mxu0 %v1150
        %1273 = vmatpush1.bf16.msra.mxu0 %v1149
        %1274 = vmatprep.subr.bf16.mxu0 %v1148
        %1275 = vmatpush1.bf16.msra.mxu0 %v1147
        %1276 = vmatprep.subr.bf16.mxu0 %v1146
        %1277 = vmatpush1.bf16.msra.mxu0 %v1145
        %1278 = vmatprep.subr.bf16.mxu0 %v1144
        %1279 = vmatpush1.bf16.msra.mxu0 %v1143
        %1280 = vmatprep.subr.bf16.mxu0 %v1142
        %1281 = vmatpush1.bf16.msra.mxu0 %v1141
        %1282 = vmatprep.subr.bf16.mxu0 %v1140
        %1283 = vmatpush1.bf16.msra.mxu0 %v1139
        %1284 = vmatprep.subr.bf16.mxu0 %v1138
        %1285 = vmatpush1.bf16.msra.mxu0 %v1137
        %1286 = vmatprep.subr.bf16.mxu0 %v1136
        %1287 = vmatpush1.bf16.msra.mxu0 %v1135
        %1288 = vmatprep.subr.bf16.mxu0 %v1166
        %1289 = vmatpush2.bf16.msra.mxu0 %v1165
        %1290 = vmatprep.subr.bf16.mxu0 %v1164
        %1291 = vmatpush2.bf16.msra.mxu0 %v1163
        %1292 = vmatprep.subr.bf16.mxu0 %v1162
        %1293 = vmatpush2.bf16.msra.mxu0 %v1161
        %1294 = vmatprep.subr.bf16.mxu0 %v1160
        %1295 = vmatpush2.bf16.msra.mxu0 %v1159
        %1296 = vmatprep.subr.bf16.mxu0 %v1158
        %1297 = vmatpush2.bf16.msra.mxu0 %v1157
        %1298 = vmatprep.subr.bf16.mxu0 %v1156
        %1299 = vmatpush2.bf16.msra.mxu0 %v1155
        %1300 = vmatprep.subr.bf16.mxu0 %v1154
        %1301 = vmatpush2.bf16.msra.mxu0 %v1153
        %1302 = vmatprep.subr.bf16.mxu0 %v1152
        %1303 = vmatpush2.bf16.msra.mxu0 %v1151
        %1304 = vmatprep.mubr.bf16.mxu0 %v844
        %1305 = vmatmul.mubr.bf16.gmra.mxu0 %v843
        %v1306 = vpop.f32.mrf.mxu0
        %v1307 = vadd.f32 %v1266, %v1306
        %v1308 = vpop.f32.mrf.mxu0
        %v1309 = vadd.f32 %v1268, %v1308
        %v1310 = vpop.f32.mrf.mxu0
        %v1311 = vpop.f32.mrf.mxu0
        %1312 = vdwg.mxu0
        %v1313 = vxor.u32 %v1307, 2147483648
        %v1314 = vxor.u32 %v1309, 2147483648
        %v1315 = vmul.f32 %v1313, 1.442695
        %v1316 = vpow.pop %v1315
        %v1317 = vmul.f32 %v1314, 1.442695
        %v1318 = vpow.pop %v1317
        %v1319 = vadd.f32 %v1316, 1.0
        %v1320 = vadd.f32 %v1318, 1.0
        %v1321 = vrcp.pop %v1319
        %v1322 = vmul.f32 1.0, %v1321
        %v1323 = vrcp.pop %v1320
        %v1324 = vmul.f32 1.0, %v1323
        %v1325 = vld [vmem:[%s313] sm:$0xff]
        %v1326 = vld [vmem:[%s313 + $0x8] sm:$0xff]
        %v1327 = vld [vmem:[%s313 + $0x10] sm:$0xff]
        %v1328 = vld [vmem:[%s313 + $0x18] sm:$0xff]
        %v1329 = vld [vmem:[%s313 + $0x20] sm:$0xff]
        %v1330 = vld [vmem:[%s313 + $0x28] sm:$0xff]
        %v1331 = vld [vmem:[%s313 + $0x30] sm:$0xff]
        %v1332 = vld [vmem:[%s313 + $0x38] sm:$0xff]
        %v1333 = vld [vmem:[%s313 + $0x40] sm:$0xff]
        %v1334 = vld [vmem:[%s313 + $0x48] sm:$0xff]
        %v1335 = vld [vmem:[%s313 + $0x50] sm:$0xff]
        %v1336 = vld [vmem:[%s313 + $0x58] sm:$0xff]
        %v1337 = vld [vmem:[%s313 + $0x60] sm:$0xff]
        %v1338 = vld [vmem:[%s313 + $0x68] sm:$0xff]
        %v1339 = vld [vmem:[%s313 + $0x70] sm:$0xff]
        %v1340 = vld [vmem:[%s313 + $0x78] sm:$0xff]
        %v1343 = vcombine.low %v1322, %v1324
        %v1345 = vunpack.c.l.s4 1966171168
        %v1346 = vunpack.c.0.s8 %v1345
        %v1347 = vlaneseq
        %v1348 = vshrl.u32 %v1347, 7
        %v1349 = vsub.s32 %v1346, %v1348
        %v1350 = vrot.slane %v1343, %v1349
        %v1351 = vcombine.high %v1350, %v1350
        %v1353 = vunpack.c.l.s4 1966171168
        %v1354 = vunpack.c.0.s8 %v1353
        %v1355 = vlaneseq
        %v1356 = vshrl.u32 %v1355, 7
        %v1357 = vsub.s32 %v1354, %v1356
        %v1358 = vrot.slane %v1350, %v1357
        %v1360 = vunpack.c.l.s4 1966171168
        %v1361 = vunpack.c.0.s8 %v1360
        %v1362 = vlaneseq
        %v1363 = vshrl.u32 %v1362, 7
        %v1364 = vsub.s32 %v1361, %v1363
        %v1365 = vrot.slane %v1351, %v1364
        %v1366 = vlaneseq
        %v1367 = vshrl.u32 %v1366, 7
        %v1368 = vsub.s32 0, %v1367
        %v1369 = vrot.slane %v1358, %v1368
        %v1370 = vlaneseq
        %v1371 = vshrl.u32 %v1370, 7
        %v1372 = vsub.s32 1, %v1371
        %v1373 = vrot.slane %v1358, %v1372
        %v1374 = vlaneseq
        %v1375 = vshrl.u32 %v1374, 7
        %v1376 = vsub.s32 0, %v1375
        %v1377 = vrot.slane %v1365, %v1376
        %v1378 = vlaneseq
        %v1379 = vshrl.u32 %v1378, 7
        %v1380 = vsub.s32 1, %v1379
        %v1381 = vrot.slane %v1365, %v1380
        %v1386 = vmul.f32 %v1325, %v1369
        %v1387 = vmul.f32 %v1326, %v1373
        %v1388 = vmul.f32 %v1327, %v1369
        %v1389 = vmul.f32 %v1328, %v1373
        %v1390 = vmul.f32 %v1329, %v1369
        %v1391 = vmul.f32 %v1330, %v1373
        %v1392 = vmul.f32 %v1331, %v1369
        %v1393 = vmul.f32 %v1332, %v1373
        %v1394 = vmul.f32 %v1333, %v1377
        %v1395 = vmul.f32 %v1334, %v1381
        %v1396 = vmul.f32 %v1335, %v1377
        %v1397 = vmul.f32 %v1336, %v1381
        %v1398 = vmul.f32 %v1337, %v1377
        %v1399 = vmul.f32 %v1338, %v1381
        %v1400 = vmul.f32 %v1339, %v1377
        %v1401 = vmul.f32 %v1340, %v1381
        %1402 = vst [vmem:[%s313] sm:$0xff] %v1386
        %1403 = vst [vmem:[%s313 + $0x8] sm:$0xff] %v1387
        %1404 = vst [vmem:[%s313 + $0x10] sm:$0xff] %v1388
        %1405 = vst [vmem:[%s313 + $0x18] sm:$0xff] %v1389
        %1406 = vst [vmem:[%s313 + $0x20] sm:$0xff] %v1390
        %1407 = vst [vmem:[%s313 + $0x28] sm:$0xff] %v1391
        %1408 = vst [vmem:[%s313 + $0x30] sm:$0xff] %v1392
        %1409 = vst [vmem:[%s313 + $0x38] sm:$0xff] %v1393
        %1410 = vst [vmem:[%s313 + $0x40] sm:$0xff] %v1394
        %1411 = vst [vmem:[%s313 + $0x48] sm:$0xff] %v1395
        %1412 = vst [vmem:[%s313 + $0x50] sm:$0xff] %v1396
        %1413 = vst [vmem:[%s313 + $0x58] sm:$0xff] %v1397
        %1414 = vst [vmem:[%s313 + $0x60] sm:$0xff] %v1398
        %1415 = vst [vmem:[%s313 + $0x68] sm:$0xff] %v1399
        %1416 = vst [vmem:[%s313 + $0x70] sm:$0xff] %v1400
        %1417 = vst [vmem:[%s313 + $0x78] sm:$0xff] %v1401
        %s1418 = sand.u32 %s186, 1
        %s1419 = scalar_lea.sflag [#allocation5], %s1418
        %s1420 = sand.u32 %s186, 1
        %s1421 = smul.addr %s1420, 128
        %s1422 = scalar_lea.vmem [#allocation8], %s1421
        // Predicated region
        $region57: #{tpu_custom_call.1} parent=47 // pred_check
          %p1423 = pneg %p196
        $region58: #{tpu_custom_call.1} parent=47 // pred_check_branch
          %1425 = sbr.rel (%p1423) target = $region60
        $region59: #{tpu_custom_call.1} parent=47 // pred_region
          %s1426 = smul.u32 2, %s26
          %s1428 = ssub.s32 2048, 2048
          %1429 = vsyncadd %s1419, %s1428
          %s1430 = smul.addr %s1426, 8
          %s1431 = smul.addr %s1430, 128
          %s1432 = scalar_lea.hbm %s7, %s1431
          %s1433 = sshll.u32 %s1422, 4
          %s1434 = int_to_ptr.vmem [resolvable:$true] %s1433
          %1439 = dma.vmem_to_hbm [thread:$0]  %s1434, 2048, %s1432, %s1419, 256, 256, 16
        $region60: #{tpu_custom_call.1} parent=47 // pred_fallthru
          _
      $region48: #{tpu_custom_call.1} parent=5 // pred_fallthru
        _
      %p1440 = scmp.le.s32.totalorder 2, %s21
      // Predicated region
      $region61: #{tpu_custom_call.1} parent=5 // pred_check
        %p1441 = pneg %p1440
      $region62: #{tpu_custom_call.1} parent=5 // pred_check_branch
        %1443 = sbr.rel (%p1441) target = $region64
      $region63: #{tpu_custom_call.1} parent=5 // pred_region
        %s1444 = ssub.s32 %s21, 2
        // Predicated region
        $region65: #{tpu_custom_call.1} parent=63 // pred_check
          %p1445 = pneg %p202
        $region66: #{tpu_custom_call.1} parent=63 // pred_check_branch
          %1447 = sbr.rel (%p1445) target = $region68
        $region67: #{tpu_custom_call.1} parent=63 // pred_region
          %s1448 = sand.u32 %s187, 1
          %s1449 = scalar_lea.sflag [#allocation5], %s1448
          %s1450 = sand.u32 %s187, 1
          %s1451 = smul.addr %s1450, 128
          %s1452 = scalar_lea.vmem [#allocation8], %s1451
          %1453 = dma.done %s1449, 2048
        $region68: #{tpu_custom_call.1} parent=63 // pred_fallthru
          _
      $region64: #{tpu_custom_call.1} parent=5 // pred_fallthru
        _
    $region6: #{tpu_custom_call.1} parent=1 // loop_footer
      %s25 = sadd.s32 1, %s21
    $region7: #{tpu_custom_call.1} parent=1 // loop_footer_branch
      %20 = sbr.rel target = $region3
    $region8: #{tpu_custom_call.1} parent=1 // loop_exit
      _
    %1454 = vsyncpa [#allocation4], 1
    %s1455 = scalar_lea.sflag [#allocation4], 1
    %1456 = vsyncpa %s1455, 1
    %1457 = vsyncpa [#allocation7], 1
    %1458 = vsyncpa [#allocation5], 1
    %s1459 = scalar_lea.sflag [#allocation5], 1
    %1460 = vsyncpa %s1459, 1

</llo_original>
